<compile_context>
chip_gen: v6e
topology: v6e:2x2x1
jax: 0.10.0
libtpu: 0.0.40
codegen_flags: <defaults>
</compile_context>

<pallas_src>
import functools

import jax
import jax.numpy as jnp
from jax.experimental import pallas as pl
from jax.experimental.pallas import tpu as pltpu

IN_FEATURES = 7
HIDDEN = 270
OUT_FEATURES = 2
OUT_PAD = 128                                    # lane-dense output width
DROPOUT_P = 0.1
DROP_THRESHOLD = int(DROPOUT_P * (1 << 32))      # drop iff bits < threshold
KEEP_SCALE = 1.0 / (1.0 - DROPOUT_P)


def net_kernel(x_ref, bits_ref, w1_ref, b1_ref, w2_ref, b2_ref, o_ref):
    # fc1: (bb, 7) @ (7, 270) + (1, 270)
    h = jnp.dot(x_ref[...], w1_ref[...],
                preferred_element_type=jnp.float32) + b1_ref[...]

    # dropout(p=0.1): integer-threshold compare on raw uint32 bits.
    keep = bits_ref[...] >= jnp.uint32(DROP_THRESHOLD)
    h = jnp.where(keep, h * jnp.float32(KEEP_SCALE), 0.0)

    # relu
    h = jnp.maximum(h, 0.0)

    # fc2 (padded to 128 output lanes): (bb, 270) @ (270, 128) + (1, 128)
    logits = jnp.dot(h, w2_ref[...],
                     preferred_element_type=jnp.float32) + b2_ref[...]

    # sigmoid (exp lands on the EUP slot); padded lanes give sigmoid(0)=0.5
    # and are sliced away by the wrapper.
    o_ref[...] = 1.0 / (1.0 + jnp.exp(-logits))


def prepare_params(w1, b1, w2, b2):
    """One-time parameter prep (hoisted out of the per-call hot path)."""
    w1t = jnp.asarray(w1, jnp.float32).T                       # (7, 270)
    b1r = jnp.asarray(b1, jnp.float32).reshape(1, HIDDEN)      # (1, 270)
    w2t = jnp.asarray(w2, jnp.float32).T                       # (270, 2)
    w2p = jnp.zeros((HIDDEN, OUT_PAD), jnp.float32).at[:, :OUT_FEATURES].set(w2t)
    b2p = jnp.zeros((1, OUT_PAD), jnp.float32).at[:, :OUT_FEATURES].set(
        jnp.asarray(b2, jnp.float32))
    return w1t, b1r, w2p, b2p


@functools.partial(jax.jit, static_argnames=("block_b",))
def net_forward(x, dropout_bits, w1t, b1r, w2p, b2p, *, block_b=128):
    """x: (B, 7) f32; dropout_bits: (B, 270) uint32; prepped params."""
    B = x.shape[0]
    num_blocks = pl.cdiv(B, block_b)
    b_pad = num_blocks * block_b
    if b_pad != B:
        x = jnp.pad(x, ((0, b_pad - B), (0, 0)))
        dropout_bits = jnp.pad(dropout_bits, ((0, b_pad - B), (0, 0)))

    extra = {}
    if jax.default_backend() == "tpu":
        extra["compiler_params"] = pltpu.CompilerParams(
            dimension_semantics=("parallel",))

    out = pl.pallas_call(
        net_kernel,
        out_shape=jax.ShapeDtypeStruct((b_pad, OUT_PAD), jnp.float32),
        grid=(num_blocks,),
        in_specs=[
            pl.BlockSpec((block_b, IN_FEATURES), lambda i: (i, 0)),   # x
            pl.BlockSpec((block_b, HIDDEN), lambda i: (i, 0)),        # dropout bits
            pl.BlockSpec((IN_FEATURES, HIDDEN), lambda i: (0, 0)),    # w1 (resident)
            pl.BlockSpec((1, HIDDEN), lambda i: (0, 0)),              # b1 (resident)
            pl.BlockSpec((HIDDEN, OUT_PAD), lambda i: (0, 0)),        # w2 (resident)
            pl.BlockSpec((1, OUT_PAD), lambda i: (0, 0)),             # b2 (resident)
        ],
        out_specs=pl.BlockSpec((block_b, OUT_PAD), lambda i: (i, 0)),
        **extra,
    )(x, dropout_bits, w1t, b1r, w2p, b2p)

    return out[:B, :OUT_FEATURES]


if __name__ == "__main__":
    key = jax.random.PRNGKey(0)
    kx, kbits, k1, k2, k3, k4 = jax.random.split(key, 6)

    B = 256
    x = jax.random.normal(kx, (B, IN_FEATURES), dtype=jnp.float32)

    # PyTorch nn.Linear-style uniform init bounds (deterministic).
    bound1 = 1.0 / (IN_FEATURES ** 0.5)
    w1 = jax.random.uniform(k1, (HIDDEN, IN_FEATURES), jnp.float32, -bound1, bound1)
    b1 = jax.random.uniform(k2, (HIDDEN,), jnp.float32, -bound1, bound1)
    bound2 = 1.0 / (HIDDEN ** 0.5)
    w2 = jax.random.uniform(k3, (OUT_FEATURES, HIDDEN), jnp.float32, -bound2, bound2)
    b2 = jax.random.uniform(k4, (OUT_FEATURES,), jnp.float32, -bound2, bound2)

    params = prepare_params(w1, b1, w2, b2)

    # TODO(synk): move dropout RNG back in-kernel via pltpu.prng_seed /
    # pltpu.prng_random_bits (with per-block seed offsets) once the
    # interpret/CPU path supports those primitives.
    dropout_bits = jax.random.bits(kbits, (B, HIDDEN), dtype=jnp.uint32)

    out = net_forward(x, dropout_bits, *params)
    out = jax.block_until_ready(out)

    assert out.shape == (B, OUT_FEATURES)
    assert bool(jnp.all((out >= 0.0) & (out <= 1.0)))
    print("KERNEL_OK")
</pallas_src>

<mosaic_0001>
module attributes {stable_mosaic.version = 11 : i64} {
  func.func @net_kernel(%arg0: i32, %arg1: memref<128x7xf32, #tpu.memory_space<vmem>>, %arg2: memref<128x270xi32, #tpu.memory_space<vmem>>, %arg3: memref<7x270xf32, #tpu.memory_space<vmem>>, %arg4: memref<1x270xf32, #tpu.memory_space<vmem>>, %arg5: memref<270x128xf32, #tpu.memory_space<vmem>>, %arg6: memref<1x128xf32, #tpu.memory_space<vmem>>, %arg7: memref<128x128xf32, #tpu.memory_space<vmem>>) attributes {dimension_semantics = [#tpu.dimension_semantics<arbitrary>], iteration_bounds = array<i64: 2>, scalar_prefetch = 0 : i64, scratch_operands = 0 : i64, tpu.core_type = #tpu.core_type<tc>, window_params = [{transform_indices = @transform_0, window_bounds = array<i64: 128, 7>}, {transform_indices = @transform_1, window_bounds = array<i64: 128, 270>}, {pipeline_mode = #tpu.pipeline_mode<synchronous>, transform_indices = @transform_2, window_bounds = array<i64: 7, 270>}, {pipeline_mode = #tpu.pipeline_mode<synchronous>, transform_indices = @transform_3, window_bounds = array<i64: 1, 270>}, {pipeline_mode = #tpu.pipeline_mode<synchronous>, transform_indices = @transform_4, window_bounds = array<i64: 270, 128>}, {pipeline_mode = #tpu.pipeline_mode<synchronous>, transform_indices = @transform_5, window_bounds = array<i64: 1, 128>}, {transform_indices = @transform_6, window_bounds = array<i64: 128, 128>}]} {
    %c0 = arith.constant 0 : index
    %c0_0 = arith.constant 0 : index
    %0 = vector.load %arg1[%c0, %c0_0] : memref<128x7xf32, #tpu.memory_space<vmem>>, vector<128x7xf32>
    %c0_1 = arith.constant 0 : index
    %c0_2 = arith.constant 0 : index
    %1 = vector.load %arg3[%c0_1, %c0_2] : memref<7x270xf32, #tpu.memory_space<vmem>>, vector<7x270xf32>
    %cst = arith.constant dense<0.000000e+00> : vector<128x270xf32>
    %2 = tpu.matmul %0, %1, %cst {dimension_numbers = #tpu.dot_dimension_numbers<[1], [0], [0], [1], [0, 0, 1, 1], [], []>} : vector<128x7xf32>, vector<7x270xf32>, vector<128x270xf32> -> vector<128x270xf32>
    %c0_3 = arith.constant 0 : index
    %c0_4 = arith.constant 0 : index
    %3 = vector.load %arg4[%c0_3, %c0_4] : memref<1x270xf32, #tpu.memory_space<vmem>>, vector<1x270xf32>
    %4 = vector.broadcast %3 : vector<1x270xf32> to vector<128x270xf32>
    %5 = arith.addf %2, %4 : vector<128x270xf32>
    %c0_5 = arith.constant 0 : index
    %c0_6 = arith.constant 0 : index
    %6 = vector.load %arg2[%c0_5, %c0_6] : memref<128x270xi32, #tpu.memory_space<vmem>>, vector<128x270xi32>
    %c429496729_i32 = arith.constant 429496729 : i32
    %7 = vector.broadcast %c429496729_i32 : i32 to vector<128x270xi32>
    %8 = arith.cmpi uge, %6, %7 : vector<128x270xi32>
    %cst_7 = arith.constant 1.11111116 : f32
    %9 = vector.broadcast %cst_7 : f32 to vector<128x270xf32>
    %10 = arith.mulf %5, %9 : vector<128x270xf32>
    %cst_8 = arith.constant 0.000000e+00 : f32
    %11 = vector.broadcast %cst_8 : f32 to vector<128x270xf32>
    %12 = arith.select %8, %10, %11 : vector<128x270xi1>, vector<128x270xf32>
    %cst_9 = arith.constant 0.000000e+00 : f32
    %13 = vector.broadcast %cst_9 : f32 to vector<128x270xf32>
    %14 = arith.maximumf %12, %13 : vector<128x270xf32>
    %c0_10 = arith.constant 0 : index
    %c0_11 = arith.constant 0 : index
    %15 = vector.load %arg5[%c0_10, %c0_11] : memref<270x128xf32, #tpu.memory_space<vmem>>, vector<270x128xf32>
    %cst_12 = arith.constant dense<0.000000e+00> : vector<128x128xf32>
    %16 = tpu.matmul %14, %15, %cst_12 {dimension_numbers = #tpu.dot_dimension_numbers<[1], [0], [0], [1], [0, 0, 1, 1], [], []>} : vector<128x270xf32>, vector<270x128xf32>, vector<128x128xf32> -> vector<128x128xf32>
    %c0_13 = arith.constant 0 : index
    %c0_14 = arith.constant 0 : index
    %17 = vector.load %arg6[%c0_13, %c0_14] : memref<1x128xf32, #tpu.memory_space<vmem>>, vector<1x128xf32>
    %18 = vector.broadcast %17 : vector<1x128xf32> to vector<128x128xf32>
    %19 = arith.addf %16, %18 : vector<128x128xf32>
    %cst_15 = arith.constant 0.000000e+00 : f32
    %20 = vector.broadcast %cst_15 : f32 to vector<128x128xf32>
    %21 = arith.subf %20, %19 : vector<128x128xf32>
    %22 = math.exp %21 : vector<128x128xf32>
    %cst_16 = arith.constant 1.000000e+00 : f32
    %23 = vector.broadcast %cst_16 : f32 to vector<128x128xf32>
    %24 = arith.addf %23, %22 : vector<128x128xf32>
    %cst_17 = arith.constant 1.000000e+00 : f32
    %25 = vector.broadcast %cst_17 : f32 to vector<128x128xf32>
    %26 = arith.divf %25, %24 : vector<128x128xf32>
    %c0_18 = arith.constant 0 : index
    %c0_19 = arith.constant 0 : index
    %27 = vector.load %arg7[%c0_18, %c0_19] : memref<128x128xf32, #tpu.memory_space<vmem>>, vector<128x128xf32>
    tpu.vector_store %arg7[%c0_18, %c0_19], %26 {strides = array<i32>} : memref<128x128xf32, #tpu.memory_space<vmem>>, vector<128x128xf32>,
    return
  }
  func.func @transform_0(%arg0: i32) -> (i32, i32) {
    %c0_i32 = arith.constant 0 : i32
    %c0_i32_0 = arith.constant 0 : i32
    return %arg0, %c0_i32 : i32, i32
  }
  func.func @transform_1(%arg0: i32) -> (i32, i32) {
    %c0_i32 = arith.constant 0 : i32
    %c0_i32_0 = arith.constant 0 : i32
    return %arg0, %c0_i32 : i32, i32
  }
  func.func @transform_2(%arg0: i32) -> (i32, i32) {
    %c0_i32 = arith.constant 0 : i32
    %c0_i32_0 = arith.constant 0 : i32
    %c0_i32_1 = arith.constant 0 : i32
    return %c0_i32, %c0_i32_0 : i32, i32
  }
  func.func @transform_3(%arg0: i32) -> (i32, i32) {
    %c0_i32 = arith.constant 0 : i32
    %c0_i32_0 = arith.constant 0 : i32
    %c0_i32_1 = arith.constant 0 : i32
    return %c0_i32, %c0_i32_0 : i32, i32
  }
  func.func @transform_4(%arg0: i32) -> (i32, i32) {
    %c0_i32 = arith.constant 0 : i32
    %c0_i32_0 = arith.constant 0 : i32
    %c0_i32_1 = arith.constant 0 : i32
    return %c0_i32, %c0_i32_0 : i32, i32
  }
  func.func @transform_5(%arg0: i32) -> (i32, i32) {
    %c0_i32 = arith.constant 0 : i32
    %c0_i32_0 = arith.constant 0 : i32
    %c0_i32_1 = arith.constant 0 : i32
    return %c0_i32, %c0_i32_0 : i32, i32
  }
  func.func @transform_6(%arg0: i32) -> (i32, i32) {
    %c0_i32 = arith.constant 0 : i32
    %c0_i32_0 = arith.constant 0 : i32
    return %arg0, %c0_i32 : i32, i32
  }
}

</mosaic_0001>

<llo_original>
// kernel: net_forward.1
$region0: #{net_forward.1}
  #allocation0 [shape = 'u32[]', space=smem, size = 0x4, offset = 0x4, fixed_abs, tag = 'smem constant byte address 0x4 - core index']
  #allocation1 [shape = 'u32[144,128]{1,0:T(1,128)}', space=vmem, size = 0x12000, scoped, tag = 'internal scratch']
  %s0 = inlined_call_operand.vmem [shape: f32[256,7], index: 0, kind: input, shape index: {}]
  %s1 = inlined_call_operand.vmem [shape: u32[256,270], index: 1, kind: input, shape index: {}]
  %s2 = inlined_call_operand.vmem [shape: f32[7,270], index: 2, kind: input, shape index: {}]
  %s3 = inlined_call_operand.vmem [shape: f32[1,270], index: 3, kind: input, shape index: {}]
  %s4 = inlined_call_operand.vmem [shape: f32[270,128], index: 4, kind: input, shape index: {}]
  %s5 = inlined_call_operand.vmem [shape: f32[1,128], index: 5, kind: input, shape index: {}]
  %s6 = inlined_call_operand.vmem [shape: f32[256,128], index: 6, kind: output, shape index: {}]
  %s7 = sld [smem:[#allocation0]]
  $region57: #{net_forward.1} parent=0
    _
  %s9 = ssub.s32 1, %s7
  %s10 = scalar_select 0, %s9, %s7
  loop: start=0, step=1, limit=4
  $region2: #{net_forward.1} parent=0 // loop_pre_header
    _
  $region3: #{net_forward.1} parent=0 // loop_header
    %s12 = sphi 0, %s16
    %p13 = scmp.ge.s32.totalorder %s12, 4
    %s22 = sphi 0, %s24
    %s25 = sphi 0, %s22
    %s26 = sphi 0, %s25
    %s42 = sphi 0, %s26
    %s48 = sphi 0, %s50
    %s51 = sphi 0, %s48
    %s52 = sphi 0, %s51
    %s68 = sphi 0, %s52
    %s72 = sphi 0, %s72
    %s74 = sphi 0, %s72
    %s75 = sphi 0, %s74
    %s89 = sphi 0, %s75
    %s93 = sphi 0, %s93
    %s95 = sphi 0, %s93
    %s96 = sphi 0, %s95
    %s110 = sphi 0, %s96
    %s114 = sphi 0, %s114
    %s116 = sphi 0, %s114
    %s117 = sphi 0, %s116
    %s131 = sphi 0, %s117
    %s135 = sphi 0, %s135
    %s137 = sphi 0, %s135
    %s138 = sphi 0, %s137
    %s152 = sphi 0, %s138
    %s158 = sphi 0, %s160
    %s161 = sphi 0, %s158
    %s162 = sphi 0, %s161
    %s178 = sphi 0, %s162
  $region4: #{net_forward.1} parent=0 // loop_header_branch
    %15 = sbr.rel (%p13) target = $region8
  $region5: #{net_forward.1} parent=0 // loop_body
    %s17 = ssub.s32 %s12, 1
    %s18 = ssub.s32 %s12, 2
    %s19 = sadd.s32 %s12, 1
    %s20 = ssub.s32 %s12, %s19
    %p21 = scmp.eq.s32.totalorder %s20, 0
    %s23 = sadd.s32 %s22, 1
    %s24 = scalar_select %p21, %s22, %s23
    %p27 = pneg %p21
    %p28 = scmp.eq.s32.totalorder %s12, 1
    %p29 = por %p27, %p28
    %p30 = scmp.ne.s32.totalorder %s22, %s25
    %p31 = scmp.eq.s32.totalorder %s12, 0
    %p32 = por %p30, %p31
    %p33 = scmp.ne.s32.totalorder %s22, %s25
    %p34 = scmp.eq.s32.totalorder %s17, 1
    %p35 = por %p33, %p34
    %p36 = scmp.ne.s32.totalorder %s25, %s26
    %p37 = scmp.eq.s32.totalorder %s17, 0
    %p38 = por %p36, %p37
    %p39 = scmp.ne.s32.totalorder %s25, %s26
    %p40 = scmp.eq.s32.totalorder %s18, 1
    %p41 = por %p39, %p40
    %p43 = scmp.ne.s32.totalorder %s26, %s42
    %p44 = scmp.eq.s32.totalorder %s18, 0
    %p45 = por %p43, %p44
    %s46 = ssub.s32 %s12, %s19
    %p47 = scmp.eq.s32.totalorder %s46, 0
    %s49 = sadd.s32 %s48, 1
    %s50 = scalar_select %p47, %s48, %s49
    %p53 = pneg %p47
    %p54 = scmp.eq.s32.totalorder %s12, 1
    %p55 = por %p53, %p54
    %p56 = scmp.ne.s32.totalorder %s48, %s51
    %p57 = scmp.eq.s32.totalorder %s12, 0
    %p58 = por %p56, %p57
    %p59 = scmp.ne.s32.totalorder %s48, %s51
    %p60 = scmp.eq.s32.totalorder %s17, 1
    %p61 = por %p59, %p60
    %p62 = scmp.ne.s32.totalorder %s51, %s52
    %p63 = scmp.eq.s32.totalorder %s17, 0
    %p64 = por %p62, %p63
    %p65 = scmp.ne.s32.totalorder %s51, %s52
    %p66 = scmp.eq.s32.totalorder %s18, 1
    %p67 = por %p65, %p66
    %p69 = scmp.ne.s32.totalorder %s52, %s68
    %p70 = scmp.eq.s32.totalorder %s18, 0
    %p71 = por %p69, %p70
    %s73 = sadd.s32 %s72, 1
    %p76 = scmp.eq.s32.totalorder %s12, 1
    %p77 = scmp.ne.s32.totalorder %s72, %s74
    %p78 = scmp.eq.s32.totalorder %s12, 0
    %p79 = por %p77, %p78
    %p80 = scmp.ne.s32.totalorder %s72, %s74
    %p81 = scmp.eq.s32.totalorder %s17, 1
    %p82 = por %p80, %p81
    %p83 = scmp.ne.s32.totalorder %s74, %s75
    %p84 = scmp.eq.s32.totalorder %s17, 0
    %p85 = por %p83, %p84
    %p86 = scmp.ne.s32.totalorder %s74, %s75
    %p87 = scmp.eq.s32.totalorder %s18, 1
    %p88 = por %p86, %p87
    %p90 = scmp.ne.s32.totalorder %s75, %s89
    %p91 = scmp.eq.s32.totalorder %s18, 0
    %p92 = por %p90, %p91
    %s94 = sadd.s32 %s93, 1
    %p97 = scmp.eq.s32.totalorder %s12, 1
    %p98 = scmp.ne.s32.totalorder %s93, %s95
    %p99 = scmp.eq.s32.totalorder %s12, 0
    %p100 = por %p98, %p99
    %p101 = scmp.ne.s32.totalorder %s93, %s95
    %p102 = scmp.eq.s32.totalorder %s17, 1
    %p103 = por %p101, %p102
    %p104 = scmp.ne.s32.totalorder %s95, %s96
    %p105 = scmp.eq.s32.totalorder %s17, 0
    %p106 = por %p104, %p105
    %p107 = scmp.ne.s32.totalorder %s95, %s96
    %p108 = scmp.eq.s32.totalorder %s18, 1
    %p109 = por %p107, %p108
    %p111 = scmp.ne.s32.totalorder %s96, %s110
    %p112 = scmp.eq.s32.totalorder %s18, 0
    %p113 = por %p111, %p112
    %s115 = sadd.s32 %s114, 1
    %p118 = scmp.eq.s32.totalorder %s12, 1
    %p119 = scmp.ne.s32.totalorder %s114, %s116
    %p120 = scmp.eq.s32.totalorder %s12, 0
    %p121 = por %p119, %p120
    %p122 = scmp.ne.s32.totalorder %s114, %s116
    %p123 = scmp.eq.s32.totalorder %s17, 1
    %p124 = por %p122, %p123
    %p125 = scmp.ne.s32.totalorder %s116, %s117
    %p126 = scmp.eq.s32.totalorder %s17, 0
    %p127 = por %p125, %p126
    %p128 = scmp.ne.s32.totalorder %s116, %s117
    %p129 = scmp.eq.s32.totalorder %s18, 1
    %p130 = por %p128, %p129
    %p132 = scmp.ne.s32.totalorder %s117, %s131
    %p133 = scmp.eq.s32.totalorder %s18, 0
    %p134 = por %p132, %p133
    %s136 = sadd.s32 %s135, 1
    %p139 = scmp.eq.s32.totalorder %s12, 1
    %p140 = scmp.ne.s32.totalorder %s135, %s137
    %p141 = scmp.eq.s32.totalorder %s12, 0
    %p142 = por %p140, %p141
    %p143 = scmp.ne.s32.totalorder %s135, %s137
    %p144 = scmp.eq.s32.totalorder %s17, 1
    %p145 = por %p143, %p144
    %p146 = scmp.ne.s32.totalorder %s137, %s138
    %p147 = scmp.eq.s32.totalorder %s17, 0
    %p148 = por %p146, %p147
    %p149 = scmp.ne.s32.totalorder %s137, %s138
    %p150 = scmp.eq.s32.totalorder %s18, 1
    %p151 = por %p149, %p150
    %p153 = scmp.ne.s32.totalorder %s138, %s152
    %p154 = scmp.eq.s32.totalorder %s18, 0
    %p155 = por %p153, %p154
    %s156 = ssub.s32 %s12, %s19
    %p157 = scmp.eq.s32.totalorder %s156, 0
    %s159 = sadd.s32 %s158, 1
    %s160 = scalar_select %p157, %s158, %s159
    %p163 = pneg %p157
    %p164 = scmp.eq.s32.totalorder %s12, 1
    %p165 = por %p163, %p164
    %p166 = scmp.ne.s32.totalorder %s158, %s161
    %p167 = scmp.eq.s32.totalorder %s12, 0
    %p168 = por %p166, %p167
    %p169 = scmp.ne.s32.totalorder %s158, %s161
    %p170 = scmp.eq.s32.totalorder %s17, 1
    %p171 = por %p169, %p170
    %p172 = scmp.ne.s32.totalorder %s161, %s162
    %p173 = scmp.eq.s32.totalorder %s17, 0
    %p174 = por %p172, %p173
    %p175 = scmp.ne.s32.totalorder %s161, %s162
    %p176 = scmp.eq.s32.totalorder %s18, 1
    %p177 = por %p175, %p176
    %p179 = scmp.ne.s32.totalorder %s162, %s178
    %p180 = scmp.eq.s32.totalorder %s18, 0
    %p181 = por %p179, %p180
    %p182 = scmp.le.s32.totalorder 1, %s12
    %p183 = scmp.lt.s32.totalorder %s12, 3
    %p184 = pnand %p182, %p183
    %p185 = pneg %p184
    // Predicated region
    $region9: #{net_forward.1} parent=5 // pred_check
      _
    $region10: #{net_forward.1} parent=5 // pred_check_branch
      %187 = sbr.rel (%p184) target = $region12
    $region11: #{net_forward.1} parent=5 // pred_region
      %s188 = ssub.s32 %s12, 1
      // Predicated region
      $region13: #{net_forward.1} parent=11 // pred_check
        %p189 = pneg %p85
      $region14: #{net_forward.1} parent=11 // pred_check_branch
        %191 = sbr.rel (%p189) target = $region16
      $region15: #{net_forward.1} parent=11 // pred_region
        _
      $region16: #{net_forward.1} parent=11 // pred_fallthru
        _
      // Predicated region
      $region17: #{net_forward.1} parent=11 // pred_check
        %p192 = pneg %p106
      $region18: #{net_forward.1} parent=11 // pred_check_branch
        %194 = sbr.rel (%p192) target = $region20
      $region19: #{net_forward.1} parent=11 // pred_region
        _
      $region20: #{net_forward.1} parent=11 // pred_fallthru
        _
      // Predicated region
      $region21: #{net_forward.1} parent=11 // pred_check
        %p195 = pneg %p127
      $region22: #{net_forward.1} parent=11 // pred_check_branch
        %197 = sbr.rel (%p195) target = $region24
      $region23: #{net_forward.1} parent=11 // pred_region
        _
      $region24: #{net_forward.1} parent=11 // pred_fallthru
        _
      // Predicated region
      $region25: #{net_forward.1} parent=11 // pred_check
        %p198 = pneg %p148
      $region26: #{net_forward.1} parent=11 // pred_check_branch
        %200 = sbr.rel (%p198) target = $region28
      $region27: #{net_forward.1} parent=11 // pred_region
        _
      $region28: #{net_forward.1} parent=11 // pred_fallthru
        _
    $region12: #{net_forward.1} parent=5 // pred_fallthru
      _
    %p201 = scmp.lt.s32.totalorder %s12, 2
    // Predicated region
    $region29: #{net_forward.1} parent=5 // pred_check
      %p202 = pneg %p201
    $region30: #{net_forward.1} parent=5 // pred_check_branch
      %204 = sbr.rel (%p202) target = $region32
    $region31: #{net_forward.1} parent=5 // pred_region
      // Predicated region
      $region33: #{net_forward.1} parent=31 // pred_check
        %p205 = pneg %p32
      $region34: #{net_forward.1} parent=31 // pred_check_branch
        %207 = sbr.rel (%p205) target = $region36
      $region35: #{net_forward.1} parent=31 // pred_region
        %s208 = smul.u32 16, %s12
        %p209 = scmp.lt.s32.totalorder %s208, 31
        %s210 = scalar_select %p209, %s208, 31
        %s211 = smul.addr %s210, 8
        %s212 = scalar_lea.vmem %s0, %s211
        %s213 = smul.u32 16, %s12
      $region36: #{net_forward.1} parent=31 // pred_fallthru
        _
      // Predicated region
      $region37: #{net_forward.1} parent=31 // pred_check
        %p214 = pneg %p58
      $region38: #{net_forward.1} parent=31 // pred_check_branch
        %216 = sbr.rel (%p214) target = $region40
      $region39: #{net_forward.1} parent=31 // pred_region
        %s217 = smul.u32 16, %s12
        %p218 = scmp.lt.s32.totalorder %s217, 31
        %s219 = scalar_select %p218, %s217, 31
        %s220 = smul.addr %s219, 3
        %s221 = smul.addr %s220, 8
        %s222 = scalar_lea.vmem %s1, %s221
        %s223 = smul.u32 16, %s12
      $region40: #{net_forward.1} parent=31 // pred_fallthru
        _
    $region32: #{net_forward.1} parent=5 // pred_fallthru
      _
    %p224 = scmp.le.s32.totalorder 1, %s12
    %p225 = scmp.lt.s32.totalorder %s12, 3
    %p226 = pnand %p224, %p225
    %p227 = pneg %p226
    // Predicated region
    $region41: #{net_forward.1} parent=5 // pred_check
      _
    $region42: #{net_forward.1} parent=5 // pred_check_branch
      %229 = sbr.rel (%p226) target = $region44
    $region43: #{net_forward.1} parent=5 // pred_region
      %s230 = ssub.s32 %s12, 1
      %s231 = smul.u32 16, %s17
      %p232 = scmp.lt.s32.totalorder %s231, 31
      %s233 = scalar_select %p232, %s231, 31
      %s234 = smul.addr %s233, 8
      %s235 = scalar_lea.vmem %s0, %s234
      %p236 = pneg %p38
      %p237 = pneg %p35
      %s238 = smul.u32 16, %s17
      %p239 = scmp.lt.s32.totalorder %s238, 31
      %s240 = scalar_select %p239, %s238, 31
      %s241 = smul.addr %s240, 3
      %s242 = smul.addr %s241, 8
      %s243 = scalar_lea.vmem %s1, %s242
      %p244 = pneg %p64
      %p245 = pneg %p61
      %p246 = pneg %p85
      %p247 = pneg %p82
      %p248 = pneg %p106
      %p249 = pneg %p103
      %p250 = pneg %p127
      %p251 = pneg %p124
      %p252 = pneg %p148
      %p253 = pneg %p145
      %p254 = pneg %p174
      %p255 = pneg %p171
      %s256 = smul.u32 16, %s17
      %p257 = scmp.lt.s32.totalorder %s256, 31
      %s258 = scalar_select %p257, %s256, 31
      %s259 = smul.addr %s258, 8
      %s260 = scalar_lea.vmem %s6, %s259
      %s261 = smul.u32 16, %s17
      %p262 = scmp.lt.s32.totalorder %s261, 31
      %s263 = scalar_select %p262, %s261, 31
      %s264 = smul.addr %s263, 8
      %s265 = scalar_lea.vmem %s0, %s264
      %s266 = smul.u32 16, %s17
      %s267 = smul.u32 16, %s17
      %p268 = scmp.lt.s32.totalorder %s267, 31
      %s269 = scalar_select %p268, %s267, 31
      %s270 = smul.addr %s269, 3
      %s271 = smul.addr %s270, 8
      %s272 = scalar_lea.vmem %s1, %s271
      %s273 = smul.u32 16, %s17
      %s274 = smul.u32 16, %s17
      %p275 = scmp.lt.s32.totalorder %s274, 31
      %s276 = scalar_select %p275, %s274, 31
      %s277 = smul.addr %s276, 8
      %s278 = scalar_lea.vmem %s6, %s277
      %s279 = smul.u32 16, %s17
      %v280 = vld [vmem:[%s265] sm:$0xff]
      %v281 = vld [vmem:[%s265 + $0x8] sm:$0xff]
      %v282 = vld [vmem:[%s265 + $0x10] sm:$0xff]
      %v283 = vld [vmem:[%s265 + $0x18] sm:$0xff]
      %v284 = vld [vmem:[%s265 + $0x20] sm:$0xff]
      %v285 = vld [vmem:[%s265 + $0x28] sm:$0xff]
      %v286 = vld [vmem:[%s265 + $0x30] sm:$0xff]
      %v287 = vld [vmem:[%s265 + $0x38] sm:$0xff]
      %v288 = vld [vmem:[%s265 + $0x40] sm:$0xff]
      %v289 = vld [vmem:[%s265 + $0x48] sm:$0xff]
      %v290 = vld [vmem:[%s265 + $0x50] sm:$0xff]
      %v291 = vld [vmem:[%s265 + $0x58] sm:$0xff]
      %v292 = vld [vmem:[%s265 + $0x60] sm:$0xff]
      %v293 = vld [vmem:[%s265 + $0x68] sm:$0xff]
      %v294 = vld [vmem:[%s265 + $0x70] sm:$0xff]
      %v295 = vld [vmem:[%s265 + $0x78] sm:$0xff]
      %v296 = vld [vmem:[%s2] sm:$0x7f]
      %v297 = vld [vmem:[%s2 + $0x8] sm:$0x7f]
      %v298 = vld [vmem:[%s2 + $0x10] sm:$0x7f]
      %v299 = vld [vmem:[%s3] sm:$0x7]
      %v301 = vlaneseq
      %v302 = vshrl.u32 %v301, 7
      %v303 = vsub.s32 0, %v302
      %v304 = vrot.slane %v299, %v303
      %v305 = vlaneseq
      %v306 = vshrl.u32 %v305, 7
      %v307 = vsub.s32 1, %v306
      %v308 = vrot.slane %v299, %v307
      %v309 = vlaneseq
      %v310 = vshrl.u32 %v309, 7
      %v311 = vsub.s32 2, %v310
      %v312 = vrot.slane %v299, %v311
      %vm316 = vcmask 56320
      %v318 = vsel %vm316, %v280, 0
      %v321 = vsel %vm316, %v281, 0
      %v324 = vsel %vm316, %v282, 0
      %v327 = vsel %vm316, %v283, 0
      %v330 = vsel %vm316, %v284, 0
      %v333 = vsel %vm316, %v285, 0
      %v336 = vsel %vm316, %v286, 0
      %v339 = vsel %vm316, %v287, 0
      %v342 = vsel %vm316, %v288, 0
      %v345 = vsel %vm316, %v289, 0
      %v348 = vsel %vm316, %v290, 0
      %v351 = vsel %vm316, %v291, 0
      %v354 = vsel %vm316, %v292, 0
      %v357 = vsel %vm316, %v293, 0
      %v360 = vsel %vm316, %v294, 0
      %v363 = vsel %vm316, %v295, 0
      %vm365 = vcmask 1046528
      %v367 = vsel %vm365, %v296, 0
      %v370 = vsel %vm365, %v297, 0
      %v373 = vsel %vm365, %v298, 0
      %375 = vmatprep.subr.mxu0 0.0
      %376 = vmatpush1.msra.mxu0 0.0
      %377 = vmatprep.subr.mxu0 0.0
      %378 = vmatpush1.msra.mxu0 0.0
      %379 = vmatprep.subr.mxu0 0.0
      %380 = vmatpush1.msra.mxu0 0.0
      %381 = vmatprep.subr.mxu0 0.0
      %382 = vmatpush1.msra.mxu0 0.0
      %383 = vmatprep.subr.mxu0 0.0
      %384 = vmatpush1.msra.mxu0 0.0
      %385 = vmatprep.subr.mxu0 0.0
      %386 = vmatpush1.msra.mxu0 0.0
      %387 = vmatprep.subr.mxu0 0.0
      %388 = vmatpush1.msra.mxu0 0.0
      %389 = vmatprep.subr.mxu0 0.0
      %390 = vmatpush1.msra.mxu0 0.0
      %391 = vmatprep.subr.mxu0 0.0
      %392 = vmatpush1.msra.mxu0 0.0
      %393 = vmatprep.subr.mxu0 0.0
      %394 = vmatpush1.msra.mxu0 0.0
      %395 = vmatprep.subr.mxu0 0.0
      %396 = vmatpush1.msra.mxu0 0.0
      %397 = vmatprep.subr.mxu0 0.0
      %398 = vmatpush1.msra.mxu0 0.0
      %399 = vmatprep.subr.mxu0 0.0
      %400 = vmatpush1.msra.mxu0 0.0
      %401 = vmatprep.subr.mxu0 0.0
      %402 = vmatpush1.msra.mxu0 0.0
      %403 = vmatprep.subr.mxu0 0.0
      %404 = vmatpush1.msra.mxu0 0.0
      %405 = vmatprep.subr.mxu0 %v370
      %406 = vmatpush1.msra.mxu0 %v367
      %407 = vmatprep.subr.mxu0 0.0
      %408 = vmatpush2.msra.mxu0 0.0
      %409 = vmatprep.subr.mxu0 0.0
      %410 = vmatpush2.msra.mxu0 0.0
      %411 = vmatprep.subr.mxu0 0.0
      %412 = vmatpush2.msra.mxu0 0.0
      %413 = vmatprep.subr.mxu0 0.0
      %414 = vmatpush2.msra.mxu0 0.0
      %415 = vmatprep.subr.mxu0 0.0
      %416 = vmatpush2.msra.mxu0 0.0
      %417 = vmatprep.subr.mxu0 0.0
      %418 = vmatpush2.msra.mxu0 0.0
      %419 = vmatprep.subr.mxu0 0.0
      %420 = vmatpush2.msra.mxu0 0.0
      %421 = vmatprep.subr.mxu0 0.0
      %422 = vmatpush2.msra.mxu0 0.0
      %423 = vmatprep.subr.mxu0 0.0
      %424 = vmatpush2.msra.mxu0 0.0
      %425 = vmatprep.subr.mxu0 0.0
      %426 = vmatpush2.msra.mxu0 0.0
      %427 = vmatprep.subr.mxu0 0.0
      %428 = vmatpush2.msra.mxu0 0.0
      %429 = vmatprep.subr.mxu0 0.0
      %430 = vmatpush2.msra.mxu0 0.0
      %431 = vmatprep.subr.mxu0 0.0
      %432 = vmatpush2.msra.mxu0 0.0
      %433 = vmatprep.subr.mxu0 0.0
      %434 = vmatpush2.msra.mxu0 0.0
      %435 = vmatprep.subr.mxu0 0.0
      %436 = vmatpush2.msra.mxu0 0.0
      %437 = vmatprep.subr.mxu0 0.0
      %438 = vmatpush2.msra.mxu0 0.0
      %439 = vmatprep.mubr.f32.mxu0 0.0
      %440 = vmatmul.mubr.f32.gmra.mxu0 %v318
      %v441 = vpop.f32.mrf.mxu0
      %v442 = vadd.f32 %v304, %v441
      %v443 = vpop.f32.mrf.mxu0
      %v444 = vadd.f32 %v308, %v443
      %445 = vmatprep.mubr.f32.mxu0 0.0
      %446 = vmatmul.mubr.f32.gmra.mxu0 %v321
      %v447 = vpop.f32.mrf.mxu0
      %v448 = vadd.f32 %v304, %v447
      %v449 = vpop.f32.mrf.mxu0
      %v450 = vadd.f32 %v308, %v449
      %451 = vmatprep.mubr.f32.mxu0 0.0
      %452 = vmatmul.mubr.f32.gmra.mxu0 %v324
      %v453 = vpop.f32.mrf.mxu0
      %v454 = vadd.f32 %v304, %v453
      %v455 = vpop.f32.mrf.mxu0
      %v456 = vadd.f32 %v308, %v455
      %457 = vmatprep.mubr.f32.mxu0 0.0
      %458 = vmatmul.mubr.f32.gmra.mxu0 %v327
      %v459 = vpop.f32.mrf.mxu0
      %v460 = vadd.f32 %v304, %v459
      %v461 = vpop.f32.mrf.mxu0
      %v462 = vadd.f32 %v308, %v461
      %463 = vmatprep.mubr.f32.mxu0 0.0
      %464 = vmatmul.mubr.f32.gmra.mxu0 %v330
      %v465 = vpop.f32.mrf.mxu0
      %v466 = vadd.f32 %v304, %v465
      %v467 = vpop.f32.mrf.mxu0
      %v468 = vadd.f32 %v308, %v467
      %469 = vmatprep.mubr.f32.mxu0 0.0
      %470 = vmatmul.mubr.f32.gmra.mxu0 %v333
      %v471 = vpop.f32.mrf.mxu0
      %v472 = vadd.f32 %v304, %v471
      %v473 = vpop.f32.mrf.mxu0
      %v474 = vadd.f32 %v308, %v473
      %475 = vmatprep.mubr.f32.mxu0 0.0
      %476 = vmatmul.mubr.f32.gmra.mxu0 %v336
      %v477 = vpop.f32.mrf.mxu0
      %v478 = vadd.f32 %v304, %v477
      %v479 = vpop.f32.mrf.mxu0
      %v480 = vadd.f32 %v308, %v479
      %481 = vmatprep.mubr.f32.mxu0 0.0
      %482 = vmatmul.mubr.f32.gmra.mxu0 %v339
      %v483 = vpop.f32.mrf.mxu0
      %v484 = vadd.f32 %v304, %v483
      %v485 = vpop.f32.mrf.mxu0
      %v486 = vadd.f32 %v308, %v485
      %487 = vmatprep.mubr.f32.mxu0 0.0
      %488 = vmatmul.mubr.f32.gmra.mxu0 %v342
      %v489 = vpop.f32.mrf.mxu0
      %v490 = vadd.f32 %v304, %v489
      %v491 = vpop.f32.mrf.mxu0
      %v492 = vadd.f32 %v308, %v491
      %493 = vmatprep.mubr.f32.mxu0 0.0
      %494 = vmatmul.mubr.f32.gmra.mxu0 %v345
      %v495 = vpop.f32.mrf.mxu0
      %v496 = vadd.f32 %v304, %v495
      %v497 = vpop.f32.mrf.mxu0
      %v498 = vadd.f32 %v308, %v497
      %499 = vmatprep.mubr.f32.mxu0 0.0
      %500 = vmatmul.mubr.f32.gmra.mxu0 %v348
      %v501 = vpop.f32.mrf.mxu0
      %v502 = vadd.f32 %v304, %v501
      %v503 = vpop.f32.mrf.mxu0
      %v504 = vadd.f32 %v308, %v503
      %505 = vmatprep.mubr.f32.mxu0 0.0
      %506 = vmatmul.mubr.f32.gmra.mxu0 %v351
      %v507 = vpop.f32.mrf.mxu0
      %v508 = vadd.f32 %v304, %v507
      %v509 = vpop.f32.mrf.mxu0
      %v510 = vadd.f32 %v308, %v509
      %511 = vmatprep.mubr.f32.mxu0 0.0
      %512 = vmatmul.mubr.f32.gmra.mxu0 %v354
      %v513 = vpop.f32.mrf.mxu0
      %v514 = vadd.f32 %v304, %v513
      %v515 = vpop.f32.mrf.mxu0
      %v516 = vadd.f32 %v308, %v515
      %517 = vmatprep.mubr.f32.mxu0 0.0
      %518 = vmatmul.mubr.f32.gmra.mxu0 %v357
      %v519 = vpop.f32.mrf.mxu0
      %v520 = vadd.f32 %v304, %v519
      %v521 = vpop.f32.mrf.mxu0
      %v522 = vadd.f32 %v308, %v521
      %523 = vmatprep.mubr.f32.mxu0 0.0
      %524 = vmatmul.mubr.f32.gmra.mxu0 %v360
      %v525 = vpop.f32.mrf.mxu0
      %v526 = vadd.f32 %v304, %v525
      %v527 = vpop.f32.mrf.mxu0
      %v528 = vadd.f32 %v308, %v527
      %529 = vmatprep.mubr.f32.mxu0 0.0
      %530 = vmatmul.mubr.f32.gmra.mxu0 %v363
      %v531 = vpop.f32.mrf.mxu0
      %v532 = vadd.f32 %v304, %v531
      %v533 = vpop.f32.mrf.mxu0
      %v534 = vadd.f32 %v308, %v533
      %535 = vdwg.mxu0
      %536 = vmatprep.subr.mxu0 0.0
      %537 = vmatpush1.msra.mxu0 0.0
      %538 = vmatprep.subr.mxu0 0.0
      %539 = vmatpush1.msra.mxu0 0.0
      %540 = vmatprep.subr.mxu0 0.0
      %541 = vmatpush1.msra.mxu0 0.0
      %542 = vmatprep.subr.mxu0 0.0
      %543 = vmatpush1.msra.mxu0 0.0
      %544 = vmatprep.subr.mxu0 0.0
      %545 = vmatpush1.msra.mxu0 0.0
      %546 = vmatprep.subr.mxu0 0.0
      %547 = vmatpush1.msra.mxu0 0.0
      %548 = vmatprep.subr.mxu0 0.0
      %549 = vmatpush1.msra.mxu0 0.0
      %550 = vmatprep.subr.mxu0 0.0
      %551 = vmatpush1.msra.mxu0 0.0
      %552 = vmatprep.subr.mxu0 0.0
      %553 = vmatpush1.msra.mxu0 0.0
      %554 = vmatprep.subr.mxu0 0.0
      %555 = vmatpush1.msra.mxu0 0.0
      %556 = vmatprep.subr.mxu0 0.0
      %557 = vmatpush1.msra.mxu0 0.0
      %558 = vmatprep.subr.mxu0 0.0
      %559 = vmatpush1.msra.mxu0 0.0
      %560 = vmatprep.subr.mxu0 0.0
      %561 = vmatpush1.msra.mxu0 0.0
      %562 = vmatprep.subr.mxu0 0.0
      %563 = vmatpush1.msra.mxu0 0.0
      %564 = vmatprep.subr.mxu0 0.0
      %565 = vmatpush1.msra.mxu0 0.0
      %566 = vmatprep.subr.mxu0 0.0
      %567 = vmatpush1.msra.mxu0 %v373
      %568 = vmatprep.subr.mxu0 0.0
      %569 = vmatpush2.msra.mxu0 0.0
      %570 = vmatprep.subr.mxu0 0.0
      %571 = vmatpush2.msra.mxu0 0.0
      %572 = vmatprep.subr.mxu0 0.0
      %573 = vmatpush2.msra.mxu0 0.0
      %574 = vmatprep.subr.mxu0 0.0
      %575 = vmatpush2.msra.mxu0 0.0
      %576 = vmatprep.subr.mxu0 0.0
      %577 = vmatpush2.msra.mxu0 0.0
      %578 = vmatprep.subr.mxu0 0.0
      %579 = vmatpush2.msra.mxu0 0.0
      %580 = vmatprep.subr.mxu0 0.0
      %581 = vmatpush2.msra.mxu0 0.0
      %582 = vmatprep.subr.mxu0 0.0
      %583 = vmatpush2.msra.mxu0 0.0
      %584 = vmatprep.subr.mxu0 0.0
      %585 = vmatpush2.msra.mxu0 0.0
      %586 = vmatprep.subr.mxu0 0.0
      %587 = vmatpush2.msra.mxu0 0.0
      %588 = vmatprep.subr.mxu0 0.0
      %589 = vmatpush2.msra.mxu0 0.0
      %590 = vmatprep.subr.mxu0 0.0
      %591 = vmatpush2.msra.mxu0 0.0
      %592 = vmatprep.subr.mxu0 0.0
      %593 = vmatpush2.msra.mxu0 0.0
      %594 = vmatprep.subr.mxu0 0.0
      %595 = vmatpush2.msra.mxu0 0.0
      %596 = vmatprep.subr.mxu0 0.0
      %597 = vmatpush2.msra.mxu0 0.0
      %598 = vmatprep.subr.mxu0 0.0
      %599 = vmatpush2.msra.mxu0 0.0
      %600 = vmatprep.mubr.f32.mxu0 0.0
      %601 = vmatmul.mubr.f32.gmra.mxu0 %v318
      %v602 = vpop.f32.mrf.mxu0
      %v603 = vadd.f32 %v312, %v602
      %v604 = vpop.f32.mrf.mxu0
      %605 = vmatprep.mubr.f32.mxu0 0.0
      %606 = vmatmul.mubr.f32.gmra.mxu0 %v321
      %v607 = vpop.f32.mrf.mxu0
      %v608 = vadd.f32 %v312, %v607
      %v609 = vpop.f32.mrf.mxu0
      %610 = vmatprep.mubr.f32.mxu0 0.0
      %611 = vmatmul.mubr.f32.gmra.mxu0 %v324
      %v612 = vpop.f32.mrf.mxu0
      %v613 = vadd.f32 %v312, %v612
      %v614 = vpop.f32.mrf.mxu0
      %615 = vmatprep.mubr.f32.mxu0 0.0
      %616 = vmatmul.mubr.f32.gmra.mxu0 %v327
      %v617 = vpop.f32.mrf.mxu0
      %v618 = vadd.f32 %v312, %v617
      %v619 = vpop.f32.mrf.mxu0
      %620 = vmatprep.mubr.f32.mxu0 0.0
      %621 = vmatmul.mubr.f32.gmra.mxu0 %v330
      %v622 = vpop.f32.mrf.mxu0
      %v623 = vadd.f32 %v312, %v622
      %v624 = vpop.f32.mrf.mxu0
      %625 = vmatprep.mubr.f32.mxu0 0.0
      %626 = vmatmul.mubr.f32.gmra.mxu0 %v333
      %v627 = vpop.f32.mrf.mxu0
      %v628 = vadd.f32 %v312, %v627
      %v629 = vpop.f32.mrf.mxu0
      %630 = vmatprep.mubr.f32.mxu0 0.0
      %631 = vmatmul.mubr.f32.gmra.mxu0 %v336
      %v632 = vpop.f32.mrf.mxu0
      %v633 = vadd.f32 %v312, %v632
      %v634 = vpop.f32.mrf.mxu0
      %635 = vmatprep.mubr.f32.mxu0 0.0
      %636 = vmatmul.mubr.f32.gmra.mxu0 %v339
      %v637 = vpop.f32.mrf.mxu0
      %v638 = vadd.f32 %v312, %v637
      %v639 = vpop.f32.mrf.mxu0
      %640 = vmatprep.mubr.f32.mxu0 0.0
      %641 = vmatmul.mubr.f32.gmra.mxu0 %v342
      %v642 = vpop.f32.mrf.mxu0
      %v643 = vadd.f32 %v312, %v642
      %v644 = vpop.f32.mrf.mxu0
      %645 = vmatprep.mubr.f32.mxu0 0.0
      %646 = vmatmul.mubr.f32.gmra.mxu0 %v345
      %v647 = vpop.f32.mrf.mxu0
      %v648 = vadd.f32 %v312, %v647
      %v649 = vpop.f32.mrf.mxu0
      %650 = vmatprep.mubr.f32.mxu0 0.0
      %651 = vmatmul.mubr.f32.gmra.mxu0 %v348
      %v652 = vpop.f32.mrf.mxu0
      %v653 = vadd.f32 %v312, %v652
      %v654 = vpop.f32.mrf.mxu0
      %655 = vmatprep.mubr.f32.mxu0 0.0
      %656 = vmatmul.mubr.f32.gmra.mxu0 %v351
      %v657 = vpop.f32.mrf.mxu0
      %v658 = vadd.f32 %v312, %v657
      %v659 = vpop.f32.mrf.mxu0
      %660 = vmatprep.mubr.f32.mxu0 0.0
      %661 = vmatmul.mubr.f32.gmra.mxu0 %v354
      %v662 = vpop.f32.mrf.mxu0
      %v663 = vadd.f32 %v312, %v662
      %v664 = vpop.f32.mrf.mxu0
      %665 = vmatprep.mubr.f32.mxu0 0.0
      %666 = vmatmul.mubr.f32.gmra.mxu0 %v357
      %v667 = vpop.f32.mrf.mxu0
      %v668 = vadd.f32 %v312, %v667
      %v669 = vpop.f32.mrf.mxu0
      %670 = vmatprep.mubr.f32.mxu0 0.0
      %671 = vmatmul.mubr.f32.gmra.mxu0 %v360
      %v672 = vpop.f32.mrf.mxu0
      %v673 = vadd.f32 %v312, %v672
      %v674 = vpop.f32.mrf.mxu0
      %675 = vmatprep.mubr.f32.mxu0 0.0
      %676 = vmatmul.mubr.f32.gmra.mxu0 %v363
      %v677 = vpop.f32.mrf.mxu0
      %v678 = vadd.f32 %v312, %v677
      %v679 = vpop.f32.mrf.mxu0
      %680 = vdwg.mxu0
      %v681 = vld [vmem:[%s272] sm:$0xff]
      %v682 = vld [vmem:[%s272 + $0x8] sm:$0xff]
      %v683 = vld [vmem:[%s272 + $0x10] sm:$0xff]
      %v684 = vld [vmem:[%s272 + $0x18] sm:$0xff]
      %v685 = vld [vmem:[%s272 + $0x20] sm:$0xff]
      %v686 = vld [vmem:[%s272 + $0x28] sm:$0xff]
      %v687 = vld [vmem:[%s272 + $0x30] sm:$0xff]
      %v688 = vld [vmem:[%s272 + $0x38] sm:$0xff]
      %v689 = vld [vmem:[%s272 + $0x40] sm:$0xff]
      %v690 = vld [vmem:[%s272 + $0x48] sm:$0xff]
      %v691 = vld [vmem:[%s272 + $0x50] sm:$0xff]
      %v692 = vld [vmem:[%s272 + $0x58] sm:$0xff]
      %v693 = vld [vmem:[%s272 + $0x60] sm:$0xff]
      %v694 = vld [vmem:[%s272 + $0x68] sm:$0xff]
      %v695 = vld [vmem:[%s272 + $0x70] sm:$0xff]
      %v696 = vld [vmem:[%s272 + $0x78] sm:$0xff]
      %v697 = vld [vmem:[%s272 + $0x80] sm:$0xff]
      %v698 = vld [vmem:[%s272 + $0x88] sm:$0xff]
      %v699 = vld [vmem:[%s272 + $0x90] sm:$0xff]
      %v700 = vld [vmem:[%s272 + $0x98] sm:$0xff]
      %v701 = vld [vmem:[%s272 + $0xa0] sm:$0xff]
      %v702 = vld [vmem:[%s272 + $0xa8] sm:$0xff]
      %v703 = vld [vmem:[%s272 + $0xb0] sm:$0xff]
      %v704 = vld [vmem:[%s272 + $0xb8] sm:$0xff]
      %v705 = vld [vmem:[%s272 + $0xc0] sm:$0xff]
      %v706 = vld [vmem:[%s272 + $0xc8] sm:$0xff]
      %v707 = vld [vmem:[%s272 + $0xd0] sm:$0xff]
      %v708 = vld [vmem:[%s272 + $0xd8] sm:$0xff]
      %v709 = vld [vmem:[%s272 + $0xe0] sm:$0xff]
      %v710 = vld [vmem:[%s272 + $0xe8] sm:$0xff]
      %v711 = vld [vmem:[%s272 + $0xf0] sm:$0xff]
      %v712 = vld [vmem:[%s272 + $0xf8] sm:$0xff]
      %v713 = vld [vmem:[%s272 + $0x100] sm:$0xff]
      %v714 = vld [vmem:[%s272 + $0x108] sm:$0xff]
      %v715 = vld [vmem:[%s272 + $0x110] sm:$0xff]
      %v716 = vld [vmem:[%s272 + $0x118] sm:$0xff]
      %v717 = vld [vmem:[%s272 + $0x120] sm:$0xff]
      %v718 = vld [vmem:[%s272 + $0x128] sm:$0xff]
      %v719 = vld [vmem:[%s272 + $0x130] sm:$0xff]
      %v720 = vld [vmem:[%s272 + $0x138] sm:$0xff]
      %v721 = vld [vmem:[%s272 + $0x140] sm:$0xff]
      %v722 = vld [vmem:[%s272 + $0x148] sm:$0xff]
      %v723 = vld [vmem:[%s272 + $0x150] sm:$0xff]
      %v724 = vld [vmem:[%s272 + $0x158] sm:$0xff]
      %v725 = vld [vmem:[%s272 + $0x160] sm:$0xff]
      %v726 = vld [vmem:[%s272 + $0x168] sm:$0xff]
      %v727 = vld [vmem:[%s272 + $0x170] sm:$0xff]
      %v728 = vld [vmem:[%s272 + $0x178] sm:$0xff]
      %vm729 = vcmp.ge.u32.totalorder %v681, 429496729
      %vm730 = vcmp.ge.u32.totalorder %v682, 429496729
      %vm731 = vcmp.ge.u32.totalorder %v683, 429496729
      %vm732 = vcmp.ge.u32.totalorder %v684, 429496729
      %vm733 = vcmp.ge.u32.totalorder %v685, 429496729
      %vm734 = vcmp.ge.u32.totalorder %v686, 429496729
      %vm735 = vcmp.ge.u32.totalorder %v687, 429496729
      %vm736 = vcmp.ge.u32.totalorder %v688, 429496729
      %vm737 = vcmp.ge.u32.totalorder %v689, 429496729
      %vm738 = vcmp.ge.u32.totalorder %v690, 429496729
      %vm739 = vcmp.ge.u32.totalorder %v691, 429496729
      %vm740 = vcmp.ge.u32.totalorder %v692, 429496729
      %vm741 = vcmp.ge.u32.totalorder %v693, 429496729
      %vm742 = vcmp.ge.u32.totalorder %v694, 429496729
      %vm743 = vcmp.ge.u32.totalorder %v695, 429496729
      %vm744 = vcmp.ge.u32.totalorder %v696, 429496729
      %vm745 = vcmp.ge.u32.totalorder %v697, 429496729
      %vm746 = vcmp.ge.u32.totalorder %v698, 429496729
      %vm747 = vcmp.ge.u32.totalorder %v699, 429496729
      %vm748 = vcmp.ge.u32.totalorder %v700, 429496729
      %vm749 = vcmp.ge.u32.totalorder %v701, 429496729
      %vm750 = vcmp.ge.u32.totalorder %v702, 429496729
      %vm751 = vcmp.ge.u32.totalorder %v703, 429496729
      %vm752 = vcmp.ge.u32.totalorder %v704, 429496729
      %vm753 = vcmp.ge.u32.totalorder %v705, 429496729
      %vm754 = vcmp.ge.u32.totalorder %v706, 429496729
      %vm755 = vcmp.ge.u32.totalorder %v707, 429496729
      %vm756 = vcmp.ge.u32.totalorder %v708, 429496729
      %vm757 = vcmp.ge.u32.totalorder %v709, 429496729
      %vm758 = vcmp.ge.u32.totalorder %v710, 429496729
      %vm759 = vcmp.ge.u32.totalorder %v711, 429496729
      %vm760 = vcmp.ge.u32.totalorder %v712, 429496729
      %vm761 = vcmp.ge.u32.totalorder %v713, 429496729
      %vm762 = vcmp.ge.u32.totalorder %v714, 429496729
      %vm763 = vcmp.ge.u32.totalorder %v715, 429496729
      %vm764 = vcmp.ge.u32.totalorder %v716, 429496729
      %vm765 = vcmp.ge.u32.totalorder %v717, 429496729
      %vm766 = vcmp.ge.u32.totalorder %v718, 429496729
      %vm767 = vcmp.ge.u32.totalorder %v719, 429496729
      %vm768 = vcmp.ge.u32.totalorder %v720, 429496729
      %vm769 = vcmp.ge.u32.totalorder %v721, 429496729
      %vm770 = vcmp.ge.u32.totalorder %v722, 429496729
      %vm771 = vcmp.ge.u32.totalorder %v723, 429496729
      %vm772 = vcmp.ge.u32.totalorder %v724, 429496729
      %vm773 = vcmp.ge.u32.totalorder %v725, 429496729
      %vm774 = vcmp.ge.u32.totalorder %v726, 429496729
      %vm775 = vcmp.ge.u32.totalorder %v727, 429496729
      %vm776 = vcmp.ge.u32.totalorder %v728, 429496729
      %v777 = vmul.f32 %v442, 1.1111112
      %v778 = vmul.f32 %v444, 1.1111112
      %v779 = vmul.f32 %v603, 1.1111112
      %v780 = vmul.f32 %v448, 1.1111112
      %v781 = vmul.f32 %v450, 1.1111112
      %v782 = vmul.f32 %v608, 1.1111112
      %v783 = vmul.f32 %v454, 1.1111112
      %v784 = vmul.f32 %v456, 1.1111112
      %v785 = vmul.f32 %v613, 1.1111112
      %v786 = vmul.f32 %v460, 1.1111112
      %v787 = vmul.f32 %v462, 1.1111112
      %v788 = vmul.f32 %v618, 1.1111112
      %v789 = vmul.f32 %v466, 1.1111112
      %v790 = vmul.f32 %v468, 1.1111112
      %v791 = vmul.f32 %v623, 1.1111112
      %v792 = vmul.f32 %v472, 1.1111112
      %v793 = vmul.f32 %v474, 1.1111112
      %v794 = vmul.f32 %v628, 1.1111112
      %v795 = vmul.f32 %v478, 1.1111112
      %v796 = vmul.f32 %v480, 1.1111112
      %v797 = vmul.f32 %v633, 1.1111112
      %v798 = vmul.f32 %v484, 1.1111112
      %v799 = vmul.f32 %v486, 1.1111112
      %v800 = vmul.f32 %v638, 1.1111112
      %v801 = vmul.f32 %v490, 1.1111112
      %v802 = vmul.f32 %v492, 1.1111112
      %v803 = vmul.f32 %v643, 1.1111112
      %v804 = vmul.f32 %v496, 1.1111112
      %v805 = vmul.f32 %v498, 1.1111112
      %v806 = vmul.f32 %v648, 1.1111112
      %v807 = vmul.f32 %v502, 1.1111112
      %v808 = vmul.f32 %v504, 1.1111112
      %v809 = vmul.f32 %v653, 1.1111112
      %v810 = vmul.f32 %v508, 1.1111112
      %v811 = vmul.f32 %v510, 1.1111112
      %v812 = vmul.f32 %v658, 1.1111112
      %v813 = vmul.f32 %v514, 1.1111112
      %v814 = vmul.f32 %v516, 1.1111112
      %v815 = vmul.f32 %v663, 1.1111112
      %v816 = vmul.f32 %v520, 1.1111112
      %v817 = vmul.f32 %v522, 1.1111112
      %v818 = vmul.f32 %v668, 1.1111112
      %v819 = vmul.f32 %v526, 1.1111112
      %v820 = vmul.f32 %v528, 1.1111112
      %v821 = vmul.f32 %v673, 1.1111112
      %v822 = vmul.f32 %v532, 1.1111112
      %v823 = vmul.f32 %v534, 1.1111112
      %v824 = vmul.f32 %v678, 1.1111112
      %v825 = vsel %vm729, %v777, 0.0
      %v826 = vsel %vm730, %v778, 0.0
      %v827 = vsel %vm731, %v779, 0.0
      %v828 = vsel %vm732, %v780, 0.0
      %v829 = vsel %vm733, %v781, 0.0
      %v830 = vsel %vm734, %v782, 0.0
      %v831 = vsel %vm735, %v783, 0.0
      %v832 = vsel %vm736, %v784, 0.0
      %v833 = vsel %vm737, %v785, 0.0
      %v834 = vsel %vm738, %v786, 0.0
      %v835 = vsel %vm739, %v787, 0.0
      %v836 = vsel %vm740, %v788, 0.0
      %v837 = vsel %vm741, %v789, 0.0
      %v838 = vsel %vm742, %v790, 0.0
      %v839 = vsel %vm743, %v791, 0.0
      %v840 = vsel %vm744, %v792, 0.0
      %v841 = vsel %vm745, %v793, 0.0
      %v842 = vsel %vm746, %v794, 0.0
      %v843 = vsel %vm747, %v795, 0.0
      %v844 = vsel %vm748, %v796, 0.0
      %v845 = vsel %vm749, %v797, 0.0
      %v846 = vsel %vm750, %v798, 0.0
      %v847 = vsel %vm751, %v799, 0.0
      %v848 = vsel %vm752, %v800, 0.0
      %v849 = vsel %vm753, %v801, 0.0
      %v850 = vsel %vm754, %v802, 0.0
      %v851 = vsel %vm755, %v803, 0.0
      %v852 = vsel %vm756, %v804, 0.0
      %v853 = vsel %vm757, %v805, 0.0
      %v854 = vsel %vm758, %v806, 0.0
      %v855 = vsel %vm759, %v807, 0.0
      %v856 = vsel %vm760, %v808, 0.0
      %v857 = vsel %vm761, %v809, 0.0
      %v858 = vsel %vm762, %v810, 0.0
      %v859 = vsel %vm763, %v811, 0.0
      %v860 = vsel %vm764, %v812, 0.0
      %v861 = vsel %vm765, %v813, 0.0
      %v862 = vsel %vm766, %v814, 0.0
      %v863 = vsel %vm767, %v815, 0.0
      %v864 = vsel %vm768, %v816, 0.0
      %v865 = vsel %vm769, %v817, 0.0
      %v866 = vsel %vm770, %v818, 0.0
      %v867 = vsel %vm771, %v819, 0.0
      %v868 = vsel %vm772, %v820, 0.0
      %v869 = vsel %vm773, %v821, 0.0
      %v870 = vsel %vm774, %v822, 0.0
      %v871 = vsel %vm775, %v823, 0.0
      %v872 = vsel %vm776, %v824, 0.0
      %v873 = vmax.f32 %v825, 0.0
      %v874 = vmax.f32 %v826, 0.0
      %v875 = vmax.f32 %v827, 0.0
      %v876 = vmax.f32 %v828, 0.0
      %v877 = vmax.f32 %v829, 0.0
      %v878 = vmax.f32 %v830, 0.0
      %v879 = vmax.f32 %v831, 0.0
      %v880 = vmax.f32 %v832, 0.0
      %v881 = vmax.f32 %v833, 0.0
      %v882 = vmax.f32 %v834, 0.0
      %v883 = vmax.f32 %v835, 0.0
      %v884 = vmax.f32 %v836, 0.0
      %v885 = vmax.f32 %v837, 0.0
      %v886 = vmax.f32 %v838, 0.0
      %v887 = vmax.f32 %v839, 0.0
      %v888 = vmax.f32 %v840, 0.0
      %v889 = vmax.f32 %v841, 0.0
      %v890 = vmax.f32 %v842, 0.0
      %v891 = vmax.f32 %v843, 0.0
      %v892 = vmax.f32 %v844, 0.0
      %v893 = vmax.f32 %v845, 0.0
      %v894 = vmax.f32 %v846, 0.0
      %v895 = vmax.f32 %v847, 0.0
      %v896 = vmax.f32 %v848, 0.0
      %v897 = vmax.f32 %v849, 0.0
      %v898 = vmax.f32 %v850, 0.0
      %v899 = vmax.f32 %v851, 0.0
      %v900 = vmax.f32 %v852, 0.0
      %v901 = vmax.f32 %v853, 0.0
      %v902 = vmax.f32 %v854, 0.0
      %v903 = vmax.f32 %v855, 0.0
      %v904 = vmax.f32 %v856, 0.0
      %v905 = vmax.f32 %v857, 0.0
      %v906 = vmax.f32 %v858, 0.0
      %v907 = vmax.f32 %v859, 0.0
      %v908 = vmax.f32 %v860, 0.0
      %v909 = vmax.f32 %v861, 0.0
      %v910 = vmax.f32 %v862, 0.0
      %v911 = vmax.f32 %v863, 0.0
      %v912 = vmax.f32 %v864, 0.0
      %v913 = vmax.f32 %v865, 0.0
      %v914 = vmax.f32 %v866, 0.0
      %v915 = vmax.f32 %v867, 0.0
      %v916 = vmax.f32 %v868, 0.0
      %v917 = vmax.f32 %v869, 0.0
      %v918 = vmax.f32 %v870, 0.0
      %v919 = vmax.f32 %v871, 0.0
      %v920 = vmax.f32 %v872, 0.0
      %v921 = vld [vmem:[%s4] sm:$0xff]
      %v922 = vld [vmem:[%s4 + $0x8] sm:$0xff]
      %v923 = vld [vmem:[%s4 + $0x10] sm:$0xff]
      %v924 = vld [vmem:[%s4 + $0x18] sm:$0xff]
      %v925 = vld [vmem:[%s4 + $0x20] sm:$0xff]
      %v926 = vld [vmem:[%s4 + $0x28] sm:$0xff]
      %v927 = vld [vmem:[%s4 + $0x30] sm:$0xff]
      %v928 = vld [vmem:[%s4 + $0x38] sm:$0xff]
      %v929 = vld [vmem:[%s4 + $0x40] sm:$0xff]
      %v930 = vld [vmem:[%s4 + $0x48] sm:$0xff]
      %v931 = vld [vmem:[%s4 + $0x50] sm:$0xff]
      %v932 = vld [vmem:[%s4 + $0x58] sm:$0xff]
      %v933 = vld [vmem:[%s4 + $0x60] sm:$0xff]
      %v934 = vld [vmem:[%s4 + $0x68] sm:$0xff]
      %v935 = vld [vmem:[%s4 + $0x70] sm:$0xff]
      %v936 = vld [vmem:[%s4 + $0x78] sm:$0xff]
      %v937 = vld [vmem:[%s4 + $0x80] sm:$0xff]
      %v938 = vld [vmem:[%s4 + $0x88] sm:$0xff]
      %v939 = vld [vmem:[%s4 + $0x90] sm:$0xff]
      %v940 = vld [vmem:[%s4 + $0x98] sm:$0xff]
      %v941 = vld [vmem:[%s4 + $0xa0] sm:$0xff]
      %v942 = vld [vmem:[%s4 + $0xa8] sm:$0xff]
      %v943 = vld [vmem:[%s4 + $0xb0] sm:$0xff]
      %v944 = vld [vmem:[%s4 + $0xb8] sm:$0xff]
      %v945 = vld [vmem:[%s4 + $0xc0] sm:$0xff]
      %v946 = vld [vmem:[%s4 + $0xc8] sm:$0xff]
      %v947 = vld [vmem:[%s4 + $0xd0] sm:$0xff]
      %v948 = vld [vmem:[%s4 + $0xd8] sm:$0xff]
      %v949 = vld [vmem:[%s4 + $0xe0] sm:$0xff]
      %v950 = vld [vmem:[%s4 + $0xe8] sm:$0xff]
      %v951 = vld [vmem:[%s4 + $0xf0] sm:$0xff]
      %v952 = vld [vmem:[%s4 + $0xf8] sm:$0xff]
      %v953 = vld [vmem:[%s4 + $0x100] sm:$0xff]
      %v954 = vld [vmem:[%s4 + $0x108] sm:$0x3f]
      %v955 = vld [vmem:[%s5] sm:$0x1]
      %v957 = vlaneseq
      %v958 = vshrl.u32 %v957, 7
      %v959 = vsub.s32 0, %v958
      %v960 = vrot.slane %v955, %v959
      %vm962 = vcmask 113664
      %v964 = vsel %vm962, %v875, 0
      %v967 = vsel %vm962, %v878, 0
      %v970 = vsel %vm962, %v881, 0
      %v973 = vsel %vm962, %v884, 0
      %v976 = vsel %vm962, %v887, 0
      %v979 = vsel %vm962, %v890, 0
      %v982 = vsel %vm962, %v893, 0
      %v985 = vsel %vm962, %v896, 0
      %v988 = vsel %vm962, %v899, 0
      %v991 = vsel %vm962, %v902, 0
      %v994 = vsel %vm962, %v905, 0
      %v997 = vsel %vm962, %v908, 0
      %v1000 = vsel %vm962, %v911, 0
      %v1003 = vsel %vm962, %v914, 0
      %v1006 = vsel %vm962, %v917, 0
      %v1009 = vsel %vm962, %v920, 0
      %vm1011 = vcmask 1045504
      %v1013 = vsel %vm1011, %v954, 0
      %1015 = vmatprep.subr.mxu0 0.0
      %1016 = vmatpush1.msra.mxu0 %v936
      %1017 = vmatprep.subr.mxu0 0.0
      %1018 = vmatpush1.msra.mxu0 %v935
      %1019 = vmatprep.subr.mxu0 0.0
      %1020 = vmatpush1.msra.mxu0 %v934
      %1021 = vmatprep.subr.mxu0 0.0
      %1022 = vmatpush1.msra.mxu0 %v933
      %1023 = vmatprep.subr.mxu0 0.0
      %1024 = vmatpush1.msra.mxu0 %v932
      %1025 = vmatprep.subr.mxu0 0.0
      %1026 = vmatpush1.msra.mxu0 %v931
      %1027 = vmatprep.subr.mxu0 0.0
      %1028 = vmatpush1.msra.mxu0 %v930
      %1029 = vmatprep.subr.mxu0 0.0
      %1030 = vmatpush1.msra.mxu0 %v929
      %1031 = vmatprep.subr.mxu0 0.0
      %1032 = vmatpush1.msra.mxu0 %v928
      %1033 = vmatprep.subr.mxu0 0.0
      %1034 = vmatpush1.msra.mxu0 %v927
      %1035 = vmatprep.subr.mxu0 0.0
      %1036 = vmatpush1.msra.mxu0 %v926
      %1037 = vmatprep.subr.mxu0 0.0
      %1038 = vmatpush1.msra.mxu0 %v925
      %1039 = vmatprep.subr.mxu0 0.0
      %1040 = vmatpush1.msra.mxu0 %v924
      %1041 = vmatprep.subr.mxu0 0.0
      %1042 = vmatpush1.msra.mxu0 %v923
      %1043 = vmatprep.subr.mxu0 0.0
      %1044 = vmatpush1.msra.mxu0 %v922
      %1045 = vmatprep.subr.mxu0 0.0
      %1046 = vmatpush1.msra.mxu0 %v921
      %1047 = vmatprep.subr.mxu0 0.0
      %1048 = vmatpush2.msra.mxu0 %v952
      %1049 = vmatprep.subr.mxu0 0.0
      %1050 = vmatpush2.msra.mxu0 %v951
      %1051 = vmatprep.subr.mxu0 0.0
      %1052 = vmatpush2.msra.mxu0 %v950
      %1053 = vmatprep.subr.mxu0 0.0
      %1054 = vmatpush2.msra.mxu0 %v949
      %1055 = vmatprep.subr.mxu0 0.0
      %1056 = vmatpush2.msra.mxu0 %v948
      %1057 = vmatprep.subr.mxu0 0.0
      %1058 = vmatpush2.msra.mxu0 %v947
      %1059 = vmatprep.subr.mxu0 0.0
      %1060 = vmatpush2.msra.mxu0 %v946
      %1061 = vmatprep.subr.mxu0 0.0
      %1062 = vmatpush2.msra.mxu0 %v945
      %1063 = vmatprep.subr.mxu0 0.0
      %1064 = vmatpush2.msra.mxu0 %v944
      %1065 = vmatprep.subr.mxu0 0.0
      %1066 = vmatpush2.msra.mxu0 %v943
      %1067 = vmatprep.subr.mxu0 0.0
      %1068 = vmatpush2.msra.mxu0 %v942
      %1069 = vmatprep.subr.mxu0 0.0
      %1070 = vmatpush2.msra.mxu0 %v941
      %1071 = vmatprep.subr.mxu0 0.0
      %1072 = vmatpush2.msra.mxu0 %v940
      %1073 = vmatprep.subr.mxu0 0.0
      %1074 = vmatpush2.msra.mxu0 %v939
      %1075 = vmatprep.subr.mxu0 0.0
      %1076 = vmatpush2.msra.mxu0 %v938
      %1077 = vmatprep.subr.mxu0 0.0
      %1078 = vmatpush2.msra.mxu0 %v937
      %1079 = vmatprep.mubr.f32.mxu0 %v874
      %1080 = vmatmul.mubr.f32.gmra.mxu0 %v873
      %v1081 = vpop.f32.mrf.mxu0
      %v1082 = vadd.f32 %v960, %v1081
      %v1083 = vpop.f32.mrf.mxu0
      %1084 = vmatprep.mubr.f32.mxu0 %v877
      %1085 = vmatmul.mubr.f32.gmra.mxu0 %v876
      %v1086 = vpop.f32.mrf.mxu0
      %v1087 = vadd.f32 %v960, %v1086
      %v1088 = vpop.f32.mrf.mxu0
      %1089 = vmatprep.mubr.f32.mxu0 %v880
      %1090 = vmatmul.mubr.f32.gmra.mxu0 %v879
      %v1091 = vpop.f32.mrf.mxu0
      %v1092 = vadd.f32 %v960, %v1091
      %v1093 = vpop.f32.mrf.mxu0
      %1094 = vmatprep.mubr.f32.mxu0 %v883
      %1095 = vmatmul.mubr.f32.gmra.mxu0 %v882
      %v1096 = vpop.f32.mrf.mxu0
      %v1097 = vadd.f32 %v960, %v1096
      %v1098 = vpop.f32.mrf.mxu0
      %1099 = vmatprep.mubr.f32.mxu0 %v886
      %1100 = vmatmul.mubr.f32.gmra.mxu0 %v885
      %v1101 = vpop.f32.mrf.mxu0
      %v1102 = vadd.f32 %v960, %v1101
      %v1103 = vpop.f32.mrf.mxu0
      %1104 = vmatprep.mubr.f32.mxu0 %v889
      %1105 = vmatmul.mubr.f32.gmra.mxu0 %v888
      %v1106 = vpop.f32.mrf.mxu0
      %v1107 = vadd.f32 %v960, %v1106
      %v1108 = vpop.f32.mrf.mxu0
      %1109 = vmatprep.mubr.f32.mxu0 %v892
      %1110 = vmatmul.mubr.f32.gmra.mxu0 %v891
      %v1111 = vpop.f32.mrf.mxu0
      %v1112 = vadd.f32 %v960, %v1111
      %v1113 = vpop.f32.mrf.mxu0
      %1114 = vmatprep.mubr.f32.mxu0 %v895
      %1115 = vmatmul.mubr.f32.gmra.mxu0 %v894
      %v1116 = vpop.f32.mrf.mxu0
      %v1117 = vadd.f32 %v960, %v1116
      %v1118 = vpop.f32.mrf.mxu0
      %1119 = vmatprep.mubr.f32.mxu0 %v898
      %1120 = vmatmul.mubr.f32.gmra.mxu0 %v897
      %v1121 = vpop.f32.mrf.mxu0
      %v1122 = vadd.f32 %v960, %v1121
      %v1123 = vpop.f32.mrf.mxu0
      %1124 = vmatprep.mubr.f32.mxu0 %v901
      %1125 = vmatmul.mubr.f32.gmra.mxu0 %v900
      %v1126 = vpop.f32.mrf.mxu0
      %v1127 = vadd.f32 %v960, %v1126
      %v1128 = vpop.f32.mrf.mxu0
      %1129 = vmatprep.mubr.f32.mxu0 %v904
      %1130 = vmatmul.mubr.f32.gmra.mxu0 %v903
      %v1131 = vpop.f32.mrf.mxu0
      %v1132 = vadd.f32 %v960, %v1131
      %v1133 = vpop.f32.mrf.mxu0
      %1134 = vmatprep.mubr.f32.mxu0 %v907
      %1135 = vmatmul.mubr.f32.gmra.mxu0 %v906
      %v1136 = vpop.f32.mrf.mxu0
      %v1137 = vadd.f32 %v960, %v1136
      %v1138 = vpop.f32.mrf.mxu0
      %1139 = vmatprep.mubr.f32.mxu0 %v910
      %1140 = vmatmul.mubr.f32.gmra.mxu0 %v909
      %v1141 = vpop.f32.mrf.mxu0
      %v1142 = vadd.f32 %v960, %v1141
      %v1143 = vpop.f32.mrf.mxu0
      %1144 = vmatprep.mubr.f32.mxu0 %v913
      %1145 = vmatmul.mubr.f32.gmra.mxu0 %v912
      %v1146 = vpop.f32.mrf.mxu0
      %v1147 = vadd.f32 %v960, %v1146
      %v1148 = vpop.f32.mrf.mxu0
      %1149 = vmatprep.mubr.f32.mxu0 %v916
      %1150 = vmatmul.mubr.f32.gmra.mxu0 %v915
      %v1151 = vpop.f32.mrf.mxu0
      %v1152 = vadd.f32 %v960, %v1151
      %v1153 = vpop.f32.mrf.mxu0
      %1154 = vmatprep.mubr.f32.mxu0 %v919
      %1155 = vmatmul.mubr.f32.gmra.mxu0 %v918
      %v1156 = vpop.f32.mrf.mxu0
      %v1157 = vadd.f32 %v960, %v1156
      %v1158 = vpop.f32.mrf.mxu0
      %1159 = vdwg.mxu0
      %1160 = vmatprep.subr.mxu0 0.0
      %1161 = vmatpush1.msra.mxu0 0.0
      %1162 = vmatprep.subr.mxu0 0.0
      %1163 = vmatpush1.msra.mxu0 0.0
      %1164 = vmatprep.subr.mxu0 0.0
      %1165 = vmatpush1.msra.mxu0 0.0
      %1166 = vmatprep.subr.mxu0 0.0
      %1167 = vmatpush1.msra.mxu0 0.0
      %1168 = vmatprep.subr.mxu0 0.0
      %1169 = vmatpush1.msra.mxu0 0.0
      %1170 = vmatprep.subr.mxu0 0.0
      %1171 = vmatpush1.msra.mxu0 0.0
      %1172 = vmatprep.subr.mxu0 0.0
      %1173 = vmatpush1.msra.mxu0 0.0
      %1174 = vmatprep.subr.mxu0 0.0
      %1175 = vmatpush1.msra.mxu0 0.0
      %1176 = vmatprep.subr.mxu0 0.0
      %1177 = vmatpush1.msra.mxu0 0.0
      %1178 = vmatprep.subr.mxu0 0.0
      %1179 = vmatpush1.msra.mxu0 0.0
      %1180 = vmatprep.subr.mxu0 0.0
      %1181 = vmatpush1.msra.mxu0 0.0
      %1182 = vmatprep.subr.mxu0 0.0
      %1183 = vmatpush1.msra.mxu0 0.0
      %1184 = vmatprep.subr.mxu0 0.0
      %1185 = vmatpush1.msra.mxu0 0.0
      %1186 = vmatprep.subr.mxu0 0.0
      %1187 = vmatpush1.msra.mxu0 0.0
      %1188 = vmatprep.subr.mxu0 0.0
      %1189 = vmatpush1.msra.mxu0 %v1013
      %1190 = vmatprep.subr.mxu0 0.0
      %1191 = vmatpush1.msra.mxu0 %v953
      %1192 = vmatprep.subr.mxu0 0.0
      %1193 = vmatpush2.msra.mxu0 0.0
      %1194 = vmatprep.subr.mxu0 0.0
      %1195 = vmatpush2.msra.mxu0 0.0
      %1196 = vmatprep.subr.mxu0 0.0
      %1197 = vmatpush2.msra.mxu0 0.0
      %1198 = vmatprep.subr.mxu0 0.0
      %1199 = vmatpush2.msra.mxu0 0.0
      %1200 = vmatprep.subr.mxu0 0.0
      %1201 = vmatpush2.msra.mxu0 0.0
      %1202 = vmatprep.subr.mxu0 0.0
      %1203 = vmatpush2.msra.mxu0 0.0
      %1204 = vmatprep.subr.mxu0 0.0
      %1205 = vmatpush2.msra.mxu0 0.0
      %1206 = vmatprep.subr.mxu0 0.0
      %1207 = vmatpush2.msra.mxu0 0.0
      %1208 = vmatprep.subr.mxu0 0.0
      %1209 = vmatpush2.msra.mxu0 0.0
      %1210 = vmatprep.subr.mxu0 0.0
      %1211 = vmatpush2.msra.mxu0 0.0
      %1212 = vmatprep.subr.mxu0 0.0
      %1213 = vmatpush2.msra.mxu0 0.0
      %1214 = vmatprep.subr.mxu0 0.0
      %1215 = vmatpush2.msra.mxu0 0.0
      %1216 = vmatprep.subr.mxu0 0.0
      %1217 = vmatpush2.msra.mxu0 0.0
      %1218 = vmatprep.subr.mxu0 0.0
      %1219 = vmatpush2.msra.mxu0 0.0
      %1220 = vmatprep.subr.mxu0 0.0
      %1221 = vmatpush2.msra.mxu0 0.0
      %1222 = vmatprep.subr.mxu0 0.0
      %1223 = vmatpush2.msra.mxu0 0.0
      %1224 = vmatprep.mubr.f32.mxu0 0.0
      %1225 = vmatmul.mubr.f32.gmra.mxu0 %v964
      %v1226 = vpop.f32.mrf.mxu0
      %v1227 = vadd.f32 %v1082, %v1226
      %v1228 = vpop.f32.mrf.mxu0
      %1229 = vmatprep.mubr.f32.mxu0 0.0
      %1230 = vmatmul.mubr.f32.gmra.mxu0 %v967
      %v1231 = vpop.f32.mrf.mxu0
      %v1232 = vadd.f32 %v1087, %v1231
      %v1233 = vpop.f32.mrf.mxu0
      %1234 = vmatprep.mubr.f32.mxu0 0.0
      %1235 = vmatmul.mubr.f32.gmra.mxu0 %v970
      %v1236 = vpop.f32.mrf.mxu0
      %v1237 = vadd.f32 %v1092, %v1236
      %v1238 = vpop.f32.mrf.mxu0
      %1239 = vmatprep.mubr.f32.mxu0 0.0
      %1240 = vmatmul.mubr.f32.gmra.mxu0 %v973
      %v1241 = vpop.f32.mrf.mxu0
      %v1242 = vadd.f32 %v1097, %v1241
      %v1243 = vpop.f32.mrf.mxu0
      %1244 = vmatprep.mubr.f32.mxu0 0.0
      %1245 = vmatmul.mubr.f32.gmra.mxu0 %v976
      %v1246 = vpop.f32.mrf.mxu0
      %v1247 = vadd.f32 %v1102, %v1246
      %v1248 = vpop.f32.mrf.mxu0
      %1249 = vmatprep.mubr.f32.mxu0 0.0
      %1250 = vmatmul.mubr.f32.gmra.mxu0 %v979
      %v1251 = vpop.f32.mrf.mxu0
      %v1252 = vadd.f32 %v1107, %v1251
      %v1253 = vpop.f32.mrf.mxu0
      %1254 = vmatprep.mubr.f32.mxu0 0.0
      %1255 = vmatmul.mubr.f32.gmra.mxu0 %v982
      %v1256 = vpop.f32.mrf.mxu0
      %v1257 = vadd.f32 %v1112, %v1256
      %v1258 = vpop.f32.mrf.mxu0
      %1259 = vmatprep.mubr.f32.mxu0 0.0
      %1260 = vmatmul.mubr.f32.gmra.mxu0 %v985
      %v1261 = vpop.f32.mrf.mxu0
      %v1262 = vadd.f32 %v1117, %v1261
      %v1263 = vpop.f32.mrf.mxu0
      %1264 = vmatprep.mubr.f32.mxu0 0.0
      %1265 = vmatmul.mubr.f32.gmra.mxu0 %v988
      %v1266 = vpop.f32.mrf.mxu0
      %v1267 = vadd.f32 %v1122, %v1266
      %v1268 = vpop.f32.mrf.mxu0
      %1269 = vmatprep.mubr.f32.mxu0 0.0
      %1270 = vmatmul.mubr.f32.gmra.mxu0 %v991
      %v1271 = vpop.f32.mrf.mxu0
      %v1272 = vadd.f32 %v1127, %v1271
      %v1273 = vpop.f32.mrf.mxu0
      %1274 = vmatprep.mubr.f32.mxu0 0.0
      %1275 = vmatmul.mubr.f32.gmra.mxu0 %v994
      %v1276 = vpop.f32.mrf.mxu0
      %v1277 = vadd.f32 %v1132, %v1276
      %v1278 = vpop.f32.mrf.mxu0
      %1279 = vmatprep.mubr.f32.mxu0 0.0
      %1280 = vmatmul.mubr.f32.gmra.mxu0 %v997
      %v1281 = vpop.f32.mrf.mxu0
      %v1282 = vadd.f32 %v1137, %v1281
      %v1283 = vpop.f32.mrf.mxu0
      %1284 = vmatprep.mubr.f32.mxu0 0.0
      %1285 = vmatmul.mubr.f32.gmra.mxu0 %v1000
      %v1286 = vpop.f32.mrf.mxu0
      %v1287 = vadd.f32 %v1142, %v1286
      %v1288 = vpop.f32.mrf.mxu0
      %1289 = vmatprep.mubr.f32.mxu0 0.0
      %1290 = vmatmul.mubr.f32.gmra.mxu0 %v1003
      %v1291 = vpop.f32.mrf.mxu0
      %v1292 = vadd.f32 %v1147, %v1291
      %v1293 = vpop.f32.mrf.mxu0
      %1294 = vmatprep.mubr.f32.mxu0 0.0
      %1295 = vmatmul.mubr.f32.gmra.mxu0 %v1006
      %v1296 = vpop.f32.mrf.mxu0
      %v1297 = vadd.f32 %v1152, %v1296
      %v1298 = vpop.f32.mrf.mxu0
      %1299 = vmatprep.mubr.f32.mxu0 0.0
      %1300 = vmatmul.mubr.f32.gmra.mxu0 %v1009
      %v1301 = vpop.f32.mrf.mxu0
      %v1302 = vadd.f32 %v1157, %v1301
      %v1303 = vpop.f32.mrf.mxu0
      %1304 = vdwg.mxu0
      %v1305 = vsub.f32 0.0, %v1227
      %v1306 = vsub.f32 0.0, %v1232
      %v1307 = vsub.f32 0.0, %v1237
      %v1308 = vsub.f32 0.0, %v1242
      %v1309 = vsub.f32 0.0, %v1247
      %v1310 = vsub.f32 0.0, %v1252
      %v1311 = vsub.f32 0.0, %v1257
      %v1312 = vsub.f32 0.0, %v1262
      %v1313 = vsub.f32 0.0, %v1267
      %v1314 = vsub.f32 0.0, %v1272
      %v1315 = vsub.f32 0.0, %v1277
      %v1316 = vsub.f32 0.0, %v1282
      %v1317 = vsub.f32 0.0, %v1287
      %v1318 = vsub.f32 0.0, %v1292
      %v1319 = vsub.f32 0.0, %v1297
      %v1320 = vsub.f32 0.0, %v1302
      %v1321 = vmul.f32 %v1305, 1.442695
      %v1322 = vpow.pop %v1321
      %v1323 = vmul.f32 %v1306, 1.442695
      %v1324 = vpow.pop %v1323
      %v1325 = vmul.f32 %v1307, 1.442695
      %v1326 = vpow.pop %v1325
      %v1327 = vmul.f32 %v1308, 1.442695
      %v1328 = vpow.pop %v1327
      %v1329 = vmul.f32 %v1309, 1.442695
      %v1330 = vpow.pop %v1329
      %v1331 = vmul.f32 %v1310, 1.442695
      %v1332 = vpow.pop %v1331
      %v1333 = vmul.f32 %v1311, 1.442695
      %v1334 = vpow.pop %v1333
      %v1335 = vmul.f32 %v1312, 1.442695
      %v1336 = vpow.pop %v1335
      %v1337 = vmul.f32 %v1313, 1.442695
      %v1338 = vpow.pop %v1337
      %v1339 = vmul.f32 %v1314, 1.442695
      %v1340 = vpow.pop %v1339
      %v1341 = vmul.f32 %v1315, 1.442695
      %v1342 = vpow.pop %v1341
      %v1343 = vmul.f32 %v1316, 1.442695
      %v1344 = vpow.pop %v1343
      %v1345 = vmul.f32 %v1317, 1.442695
      %v1346 = vpow.pop %v1345
      %v1347 = vmul.f32 %v1318, 1.442695
      %v1348 = vpow.pop %v1347
      %v1349 = vmul.f32 %v1319, 1.442695
      %v1350 = vpow.pop %v1349
      %v1351 = vmul.f32 %v1320, 1.442695
      %v1352 = vpow.pop %v1351
      %v1353 = vadd.f32 %v1322, 1.0
      %v1354 = vadd.f32 %v1324, 1.0
      %v1355 = vadd.f32 %v1326, 1.0
      %v1356 = vadd.f32 %v1328, 1.0
      %v1357 = vadd.f32 %v1330, 1.0
      %v1358 = vadd.f32 %v1332, 1.0
      %v1359 = vadd.f32 %v1334, 1.0
      %v1360 = vadd.f32 %v1336, 1.0
      %v1361 = vadd.f32 %v1338, 1.0
      %v1362 = vadd.f32 %v1340, 1.0
      %v1363 = vadd.f32 %v1342, 1.0
      %v1364 = vadd.f32 %v1344, 1.0
      %v1365 = vadd.f32 %v1346, 1.0
      %v1366 = vadd.f32 %v1348, 1.0
      %v1367 = vadd.f32 %v1350, 1.0
      %v1368 = vadd.f32 %v1352, 1.0
      %v1369 = vrcp.pop %v1353
      %v1370 = vmul.f32 1.0, %v1369
      %v1371 = vrcp.pop %v1354
      %v1372 = vmul.f32 1.0, %v1371
      %v1373 = vrcp.pop %v1355
      %v1374 = vmul.f32 1.0, %v1373
      %v1375 = vrcp.pop %v1356
      %v1376 = vmul.f32 1.0, %v1375
      %v1377 = vrcp.pop %v1357
      %v1378 = vmul.f32 1.0, %v1377
      %v1379 = vrcp.pop %v1358
      %v1380 = vmul.f32 1.0, %v1379
      %v1381 = vrcp.pop %v1359
      %v1382 = vmul.f32 1.0, %v1381
      %v1383 = vrcp.pop %v1360
      %v1384 = vmul.f32 1.0, %v1383
      %v1385 = vrcp.pop %v1361
      %v1386 = vmul.f32 1.0, %v1385
      %v1387 = vrcp.pop %v1362
      %v1388 = vmul.f32 1.0, %v1387
      %v1389 = vrcp.pop %v1363
      %v1390 = vmul.f32 1.0, %v1389
      %v1391 = vrcp.pop %v1364
      %v1392 = vmul.f32 1.0, %v1391
      %v1393 = vrcp.pop %v1365
      %v1394 = vmul.f32 1.0, %v1393
      %v1395 = vrcp.pop %v1366
      %v1396 = vmul.f32 1.0, %v1395
      %v1397 = vrcp.pop %v1367
      %v1398 = vmul.f32 1.0, %v1397
      %v1399 = vrcp.pop %v1368
      %v1400 = vmul.f32 1.0, %v1399
      %1401 = vst [vmem:[%s278] sm:$0xff] %v1370
      %1402 = vst [vmem:[%s278 + $0x8] sm:$0xff] %v1372
      %1403 = vst [vmem:[%s278 + $0x10] sm:$0xff] %v1374
      %1404 = vst [vmem:[%s278 + $0x18] sm:$0xff] %v1376
      %1405 = vst [vmem:[%s278 + $0x20] sm:$0xff] %v1378
      %1406 = vst [vmem:[%s278 + $0x28] sm:$0xff] %v1380
      %1407 = vst [vmem:[%s278 + $0x30] sm:$0xff] %v1382
      %1408 = vst [vmem:[%s278 + $0x38] sm:$0xff] %v1384
      %1409 = vst [vmem:[%s278 + $0x40] sm:$0xff] %v1386
      %1410 = vst [vmem:[%s278 + $0x48] sm:$0xff] %v1388
      %1411 = vst [vmem:[%s278 + $0x50] sm:$0xff] %v1390
      %1412 = vst [vmem:[%s278 + $0x58] sm:$0xff] %v1392
      %1413 = vst [vmem:[%s278 + $0x60] sm:$0xff] %v1394
      %1414 = vst [vmem:[%s278 + $0x68] sm:$0xff] %v1396
      %1415 = vst [vmem:[%s278 + $0x70] sm:$0xff] %v1398
      %1416 = vst [vmem:[%s278 + $0x78] sm:$0xff] %v1400
      %s1417 = smul.u32 16, %s17
      %p1418 = scmp.lt.s32.totalorder %s1417, 31
      %s1419 = scalar_select %p1418, %s1417, 31
      %s1420 = smul.addr %s1419, 8
      %s1421 = scalar_lea.vmem %s6, %s1420
      // Predicated region
      $region45: #{net_forward.1} parent=43 // pred_check
        %p1422 = pneg %p171
      $region46: #{net_forward.1} parent=43 // pred_check_branch
        %1424 = sbr.rel (%p1422) target = $region48
      $region47: #{net_forward.1} parent=43 // pred_region
        %s1425 = smul.u32 16, %s17
      $region48: #{net_forward.1} parent=43 // pred_fallthru
        _
    $region44: #{net_forward.1} parent=5 // pred_fallthru
      _
    %p1426 = scmp.le.s32.totalorder 2, %s12
    // Predicated region
    $region49: #{net_forward.1} parent=5 // pred_check
      %p1427 = pneg %p1426
    $region50: #{net_forward.1} parent=5 // pred_check_branch
      %1429 = sbr.rel (%p1427) target = $region52
    $region51: #{net_forward.1} parent=5 // pred_region
      %s1430 = ssub.s32 %s12, 2
      // Predicated region
      $region53: #{net_forward.1} parent=51 // pred_check
        %p1431 = pneg %p177
      $region54: #{net_forward.1} parent=51 // pred_check_branch
        %1433 = sbr.rel (%p1431) target = $region56
      $region55: #{net_forward.1} parent=51 // pred_region
        %s1434 = smul.u32 16, %s18
        %p1435 = scmp.lt.s32.totalorder %s1434, 31
        %s1436 = scalar_select %p1435, %s1434, 31
        %s1437 = smul.addr %s1436, 8
        %s1438 = scalar_lea.vmem %s6, %s1437
      $region56: #{net_forward.1} parent=51 // pred_fallthru
        _
    $region52: #{net_forward.1} parent=5 // pred_fallthru
      _
  $region6: #{net_forward.1} parent=0 // loop_footer
    %s16 = sadd.s32 1, %s12
  $region7: #{net_forward.1} parent=0 // loop_footer_branch
    %11 = sbr.rel target = $region3
  $region8: #{net_forward.1} parent=0 // loop_exit
    _

</llo_original>
